<compile_context>
chip_gen: v5e
topology: v5e:2x2
jax: 0.10.0
libtpu: 0.0.40
codegen_flags: <defaults>
</compile_context>

<pallas_src>
import functools

import jax
import jax.numpy as jnp
from jax import lax
from jax.experimental import pallas as pl
from jax.experimental.pallas import tpu as pltpu

CP = 8  # channels padded to one full sublane group for aligned tap-stack stores


def _round_up(n, m):
    return ((n + m - 1) // m) * m


def _conv_fused_kernel(x_ref, w_ref, o_ref, stack_ref, *, deltas, np_out, batch):
    """Single grid step: whole (padded) batch resident in VMEM.

    x_ref:     (B, CP, NIN)        zero-padded image, spatial flattened, f32
    w_ref:     (OC, KT*CP + CP)    prepared weight, last column group = bias
    o_ref:     (B, OC, NP)         dense stride-1 flattened output, f32
    stack_ref: (KT*CP + CP, B*NP)  VMEM tap-stack scratch
    """
    kt = len(deltas)

    # Build the tap stack once.  Stores are fully aligned: sublane offsets are
    # multiples of 8 (CP=8), lane offsets multiples of 128 (NP % 128 == 0).
    # The lane-shifted reads (offset d) are the only misaligned accesses and
    # are paid exactly once per tap.
    for b in range(batch):
        col0 = b * np_out
        for t, d in enumerate(deltas):
            stack_ref[t * CP:(t + 1) * CP, col0:col0 + np_out] = (
                x_ref[b, :, d:d + np_out])

    # Bias row group: row kt*CP is ones (pairs with the bias column of w); the
    # remaining CP-1 rows are written to zero so uninitialized VMEM can never
    # leak NaNs into the matmul (their weight columns are zero).
    rows = lax.broadcasted_iota(jnp.int32, (CP, batch * np_out), 0)
    stack_ref[kt * CP:(kt + 1) * CP, :] = (rows == 0).astype(stack_ref.dtype)

    # One MXU matmul for the whole conv (+ bias), f32 accumulation.
    y = jnp.dot(w_ref[...], stack_ref[...], preferred_element_type=jnp.float32)
    y = jnp.maximum(y, 0.0)                                     # ReLU
    for b in range(batch):
        o_ref[b] = y[:, b * np_out:(b + 1) * np_out].astype(o_ref.dtype)


def prepare_conv_params(weight, bias):
    """Hoisted parameter prep (call ONCE per module, not per forward call).

    (OC, C, KH, KW) weight + (OC,) bias  ->  (OC, KH*KW*CP + CP) matrix whose
    column (kh*KW + kw)*CP + c multiplies the tap-stack row holding channel c
    of the (kh, kw)-shifted view; the last column group holds the bias.
    """
    OC, C, KH, KW = weight.shape
    assert C <= CP
    KT = KH * KW
    wt = jnp.transpose(weight, (2, 3, 1, 0)).reshape(KT, C, OC)   # (KT, C, OC)
    wt = jnp.pad(wt, ((0, 0), (0, CP - C), (0, 0)))               # zero channels
    w_main = jnp.transpose(wt.reshape(KT * CP, OC))               # (OC, KT*CP)
    bias_cols = jnp.zeros((OC, CP), weight.dtype).at[:, 0].set(bias)
    return jnp.concatenate([w_main, bias_cols], axis=1).astype(jnp.float32)


def conv_block_forward(x_nchw, w_prep, *, kernel_size=3, stride=1, padding=1):
    """ConvBlock forward: ZeroPad2d(padding) -> Conv2d(stride, bias) -> ReLU.

    x_nchw: (B, C, H, W) f32;  w_prep: output of prepare_conv_params.
    Returns (B, OC, OH, OW) f32.
    """
    B, C, H, W = x_nchw.shape
    assert C <= CP
    KH = KW = kernel_size
    KT = KH * KW
    OC, K = w_prep.shape
    assert K == KT * CP + CP

    Hp, Wp = H + 2 * padding, W + 2 * padding
    OH = (Hp - KH) // stride + 1
    OW = (Wp - KW) // stride + 1

    # Dense stride-1 output positions (lane-dense, multiple of 128) and input
    # slack so every tap read [d, d + NP) stays inside the block (no OOB).
    NP = _round_up(Hp * Wp, 128)
    max_delta = (KH - 1) * Wp + (KW - 1)
    extra_rows = -(-(NP + max_delta - Hp * Wp) // Wp)   # ceil-div
    NIN = (Hp + extra_rows) * Wp

    # Single pad op: channel pad to CP + spatial zero pad + trailing halo rows.
    xp = jnp.pad(x_nchw, ((0, 0), (0, CP - C),
                          (padding, padding + extra_rows), (padding, padding)))
    xf = xp.reshape(B, CP, NIN)                          # contiguous -> free

    # Tap t = kh*KW + kw pairs with flattened-spatial delta kh*Wp + kw.
    deltas = tuple(kh * Wp + kw for kh in range(KH) for kw in range(KW))
    kernel = functools.partial(_conv_fused_kernel, deltas=deltas,
                               np_out=NP, batch=B)

    y = pl.pallas_call(
        kernel,
        out_shape=jax.ShapeDtypeStruct((B, OC, NP), jnp.float32),
        grid_spec=pltpu.PrefetchScalarGridSpec(
            num_scalar_prefetch=0,
            grid=(1,),   # B=2 folded onto lanes; see TODO(synk) above for large B
            in_specs=[
                pl.BlockSpec((B, CP, NIN), lambda i: (0, 0, 0)),
                pl.BlockSpec((OC, K), lambda i: (0, 0)),
            ],
            out_specs=pl.BlockSpec((B, OC, NP), lambda i: (0, 0, 0)),
            scratch_shapes=[pltpu.VMEM((K, B * NP), jnp.float32)],
        ),
        compiler_params=pltpu.CompilerParams(
            dimension_semantics=("arbitrary",)),
    )(xf, w_prep)

    # Crop the dense stride-1 output down to the valid (strided) conv outputs;
    # under jit this fuses with the kernel output read (single pass).
    # TODO(synk): for stride > 1 this computes Hp*Wp positions then subsamples.
    y = y[:, :, :Hp * Wp].reshape(B, OC, Hp, Wp)
    return y[:, :, 0:(OH - 1) * stride + 1:stride,
             0:(OW - 1) * stride + 1:stride]


def _reference_forward(x_nchw, weight, bias, *, stride=1, padding=1):
    # Pure-JAX reference (torch: ZeroPad2d -> Conv2d(bias) -> ReLU).
    y = lax.conv_general_dilated(
        x_nchw, weight,
        window_strides=(stride, stride),
        padding=((padding, padding), (padding, padding)),
        dimension_numbers=("NCHW", "OIHW", "NCHW"),
        precision=lax.Precision.HIGHEST,
    )
    return jnp.maximum(y + bias.reshape(1, -1, 1, 1), 0.0)


if __name__ == "__main__":
    # ConvBlock(input_dim=4, output_dim=8, kernel_size=3, stride=1, padding=1,
    #           norm='none', activation='relu', pad_type='zero')
    B, C, H, W = 2, 4, 16, 16
    OC, KH, KW = 8, 3, 3
    stride, padding = 1, 1

    key = jax.random.PRNGKey(0)
    kx, kw_, kb = jax.random.split(key, 3)
    x = jax.random.normal(kx, (B, C, H, W), dtype=jnp.float32)
    fan_in = C * KH * KW
    weight = jax.random.normal(kw_, (OC, C, KH, KW), dtype=jnp.float32) / jnp.sqrt(fan_in)
    bias = jax.random.normal(kb, (OC,), dtype=jnp.float32) * 0.1

    ref = _reference_forward(x, weight, bias, stride=stride, padding=padding)

    # Parameter prep hoisted out of the per-call forward path (done once).
    w_prep = prepare_conv_params(weight, bias)

    fwd = jax.jit(functools.partial(conv_block_forward, kernel_size=KH,
                                    stride=stride, padding=padding))
    out = jax.block_until_ready(fwd(x, w_prep))

    assert out.shape == (B, OC, H, W), out.shape
    err = float(jnp.max(jnp.abs(out - ref)))
    # f32 data / f32 accumulation; tolerance covers MXU pass decomposition.
    assert err < 2e-2, err

    print("KERNEL_OK")
</pallas_src>

<mosaic_0001>
module attributes {stable_mosaic.version = 11 : i64} {
  func.func @_conv_fused_kernel(%arg0: i32, %arg1: memref<2x8x432xf32, #tpu.memory_space<vmem>>, %arg2: memref<8x80xf32, #tpu.memory_space<vmem>>, %arg3: memref<2x8x384xf32, #tpu.memory_space<vmem>>, %arg4: memref<80x768xf32, #tpu.memory_space<vmem>>) attributes {dimension_semantics = [#tpu.dimension_semantics<arbitrary>], iteration_bounds = array<i64: 1>, scalar_prefetch = 0 : i64, scratch_operands = 1 : i64, tpu.core_type = #tpu.core_type<tc>, window_params = [{pipeline_mode = #tpu.pipeline_mode<synchronous>, transform_indices = @transform_0, window_bounds = array<i64: 2, 8, 432>}, {pipeline_mode = #tpu.pipeline_mode<synchronous>, transform_indices = @transform_1, window_bounds = array<i64: 8, 80>}, {pipeline_mode = #tpu.pipeline_mode<synchronous>, transform_indices = @transform_2, window_bounds = array<i64: 2, 8, 384>}]} {
    %c0 = arith.constant 0 : index
    %c0_0 = arith.constant 0 : index
    %c0_1 = arith.constant 0 : index
    %0 = vector.load %arg1[%c0, %c0_0, %c0_1] : memref<2x8x432xf32, #tpu.memory_space<vmem>>, vector<1x8x384xf32>
    %1 = vector.shape_cast %0 : vector<1x8x384xf32> to vector<8x384xf32>
    %c0_2 = arith.constant 0 : index
    %c0_3 = arith.constant 0 : index
    %2 = vector.load %arg4[%c0_2, %c0_3] : memref<80x768xf32, #tpu.memory_space<vmem>>, vector<8x384xf32>
    tpu.vector_store %arg4[%c0_2, %c0_3], %1 {strides = array<i32>} : memref<80x768xf32, #tpu.memory_space<vmem>>, vector<8x384xf32>,
    %c0_4 = arith.constant 0 : index
    %c0_5 = arith.constant 0 : index
    %c1 = arith.constant 1 : index
    %3 = vector.load %arg1[%c0_4, %c0_5, %c1] : memref<2x8x432xf32, #tpu.memory_space<vmem>>, vector<1x8x384xf32>
    %4 = vector.shape_cast %3 : vector<1x8x384xf32> to vector<8x384xf32>
    %c8 = arith.constant 8 : index
    %c0_6 = arith.constant 0 : index
    %5 = vector.load %arg4[%c8, %c0_6] : memref<80x768xf32, #tpu.memory_space<vmem>>, vector<8x384xf32>
    tpu.vector_store %arg4[%c8, %c0_6], %4 {strides = array<i32>} : memref<80x768xf32, #tpu.memory_space<vmem>>, vector<8x384xf32>,
    %c0_7 = arith.constant 0 : index
    %c0_8 = arith.constant 0 : index
    %c2 = arith.constant 2 : index
    %6 = vector.load %arg1[%c0_7, %c0_8, %c2] : memref<2x8x432xf32, #tpu.memory_space<vmem>>, vector<1x8x384xf32>
    %7 = vector.shape_cast %6 : vector<1x8x384xf32> to vector<8x384xf32>
    %c16 = arith.constant 16 : index
    %c0_9 = arith.constant 0 : index
    %8 = vector.load %arg4[%c16, %c0_9] : memref<80x768xf32, #tpu.memory_space<vmem>>, vector<8x384xf32>
    tpu.vector_store %arg4[%c16, %c0_9], %7 {strides = array<i32>} : memref<80x768xf32, #tpu.memory_space<vmem>>, vector<8x384xf32>,
    %c0_10 = arith.constant 0 : index
    %c0_11 = arith.constant 0 : index
    %c18 = arith.constant 18 : index
    %9 = vector.load %arg1[%c0_10, %c0_11, %c18] : memref<2x8x432xf32, #tpu.memory_space<vmem>>, vector<1x8x384xf32>
    %10 = vector.shape_cast %9 : vector<1x8x384xf32> to vector<8x384xf32>
    %c24 = arith.constant 24 : index
    %c0_12 = arith.constant 0 : index
    %11 = vector.load %arg4[%c24, %c0_12] : memref<80x768xf32, #tpu.memory_space<vmem>>, vector<8x384xf32>
    tpu.vector_store %arg4[%c24, %c0_12], %10 {strides = array<i32>} : memref<80x768xf32, #tpu.memory_space<vmem>>, vector<8x384xf32>,
    %c0_13 = arith.constant 0 : index
    %c0_14 = arith.constant 0 : index
    %c19 = arith.constant 19 : index
    %12 = vector.load %arg1[%c0_13, %c0_14, %c19] : memref<2x8x432xf32, #tpu.memory_space<vmem>>, vector<1x8x384xf32>
    %13 = vector.shape_cast %12 : vector<1x8x384xf32> to vector<8x384xf32>
    %c32 = arith.constant 32 : index
    %c0_15 = arith.constant 0 : index
    %14 = vector.load %arg4[%c32, %c0_15] : memref<80x768xf32, #tpu.memory_space<vmem>>, vector<8x384xf32>
    tpu.vector_store %arg4[%c32, %c0_15], %13 {strides = array<i32>} : memref<80x768xf32, #tpu.memory_space<vmem>>, vector<8x384xf32>,
    %c0_16 = arith.constant 0 : index
    %c0_17 = arith.constant 0 : index
    %c20 = arith.constant 20 : index
    %15 = vector.load %arg1[%c0_16, %c0_17, %c20] : memref<2x8x432xf32, #tpu.memory_space<vmem>>, vector<1x8x384xf32>
    %16 = vector.shape_cast %15 : vector<1x8x384xf32> to vector<8x384xf32>
    %c40 = arith.constant 40 : index
    %c0_18 = arith.constant 0 : index
    %17 = vector.load %arg4[%c40, %c0_18] : memref<80x768xf32, #tpu.memory_space<vmem>>, vector<8x384xf32>
    tpu.vector_store %arg4[%c40, %c0_18], %16 {strides = array<i32>} : memref<80x768xf32, #tpu.memory_space<vmem>>, vector<8x384xf32>,
    %c0_19 = arith.constant 0 : index
    %c0_20 = arith.constant 0 : index
    %c36 = arith.constant 36 : index
    %18 = vector.load %arg1[%c0_19, %c0_20, %c36] : memref<2x8x432xf32, #tpu.memory_space<vmem>>, vector<1x8x384xf32>
    %19 = vector.shape_cast %18 : vector<1x8x384xf32> to vector<8x384xf32>
    %c48 = arith.constant 48 : index
    %c0_21 = arith.constant 0 : index
    %20 = vector.load %arg4[%c48, %c0_21] : memref<80x768xf32, #tpu.memory_space<vmem>>, vector<8x384xf32>
    tpu.vector_store %arg4[%c48, %c0_21], %19 {strides = array<i32>} : memref<80x768xf32, #tpu.memory_space<vmem>>, vector<8x384xf32>,
    %c0_22 = arith.constant 0 : index
    %c0_23 = arith.constant 0 : index
    %c37 = arith.constant 37 : index
    %21 = vector.load %arg1[%c0_22, %c0_23, %c37] : memref<2x8x432xf32, #tpu.memory_space<vmem>>, vector<1x8x384xf32>
    %22 = vector.shape_cast %21 : vector<1x8x384xf32> to vector<8x384xf32>
    %c56 = arith.constant 56 : index
    %c0_24 = arith.constant 0 : index
    %23 = vector.load %arg4[%c56, %c0_24] : memref<80x768xf32, #tpu.memory_space<vmem>>, vector<8x384xf32>
    tpu.vector_store %arg4[%c56, %c0_24], %22 {strides = array<i32>} : memref<80x768xf32, #tpu.memory_space<vmem>>, vector<8x384xf32>,
    %c0_25 = arith.constant 0 : index
    %c0_26 = arith.constant 0 : index
    %c38 = arith.constant 38 : index
    %24 = vector.load %arg1[%c0_25, %c0_26, %c38] : memref<2x8x432xf32, #tpu.memory_space<vmem>>, vector<1x8x384xf32>
    %25 = vector.shape_cast %24 : vector<1x8x384xf32> to vector<8x384xf32>
    %c64 = arith.constant 64 : index
    %c0_27 = arith.constant 0 : index
    %26 = vector.load %arg4[%c64, %c0_27] : memref<80x768xf32, #tpu.memory_space<vmem>>, vector<8x384xf32>
    tpu.vector_store %arg4[%c64, %c0_27], %25 {strides = array<i32>} : memref<80x768xf32, #tpu.memory_space<vmem>>, vector<8x384xf32>,
    %c1_28 = arith.constant 1 : index
    %c0_29 = arith.constant 0 : index
    %c0_30 = arith.constant 0 : index
    %27 = vector.load %arg1[%c1_28, %c0_29, %c0_30] : memref<2x8x432xf32, #tpu.memory_space<vmem>>, vector<1x8x384xf32>
    %28 = vector.shape_cast %27 : vector<1x8x384xf32> to vector<8x384xf32>
    %c0_31 = arith.constant 0 : index
    %c384 = arith.constant 384 : index
    %29 = vector.load %arg4[%c0_31, %c384] : memref<80x768xf32, #tpu.memory_space<vmem>>, vector<8x384xf32>
    tpu.vector_store %arg4[%c0_31, %c384], %28 {strides = array<i32>} : memref<80x768xf32, #tpu.memory_space<vmem>>, vector<8x384xf32>,
    %c1_32 = arith.constant 1 : index
    %c0_33 = arith.constant 0 : index
    %c1_34 = arith.constant 1 : index
    %30 = vector.load %arg1[%c1_32, %c0_33, %c1_34] : memref<2x8x432xf32, #tpu.memory_space<vmem>>, vector<1x8x384xf32>
    %31 = vector.shape_cast %30 : vector<1x8x384xf32> to vector<8x384xf32>
    %c8_35 = arith.constant 8 : index
    %c384_36 = arith.constant 384 : index
    %32 = vector.load %arg4[%c8_35, %c384_36] : memref<80x768xf32, #tpu.memory_space<vmem>>, vector<8x384xf32>
    tpu.vector_store %arg4[%c8_35, %c384_36], %31 {strides = array<i32>} : memref<80x768xf32, #tpu.memory_space<vmem>>, vector<8x384xf32>,
    %c1_37 = arith.constant 1 : index
    %c0_38 = arith.constant 0 : index
    %c2_39 = arith.constant 2 : index
    %33 = vector.load %arg1[%c1_37, %c0_38, %c2_39] : memref<2x8x432xf32, #tpu.memory_space<vmem>>, vector<1x8x384xf32>
    %34 = vector.shape_cast %33 : vector<1x8x384xf32> to vector<8x384xf32>
    %c16_40 = arith.constant 16 : index
    %c384_41 = arith.constant 384 : index
    %35 = vector.load %arg4[%c16_40, %c384_41] : memref<80x768xf32, #tpu.memory_space<vmem>>, vector<8x384xf32>
    tpu.vector_store %arg4[%c16_40, %c384_41], %34 {strides = array<i32>} : memref<80x768xf32, #tpu.memory_space<vmem>>, vector<8x384xf32>,
    %c1_42 = arith.constant 1 : index
    %c0_43 = arith.constant 0 : index
    %c18_44 = arith.constant 18 : index
    %36 = vector.load %arg1[%c1_42, %c0_43, %c18_44] : memref<2x8x432xf32, #tpu.memory_space<vmem>>, vector<1x8x384xf32>
    %37 = vector.shape_cast %36 : vector<1x8x384xf32> to vector<8x384xf32>
    %c24_45 = arith.constant 24 : index
    %c384_46 = arith.constant 384 : index
    %38 = vector.load %arg4[%c24_45, %c384_46] : memref<80x768xf32, #tpu.memory_space<vmem>>, vector<8x384xf32>
    tpu.vector_store %arg4[%c24_45, %c384_46], %37 {strides = array<i32>} : memref<80x768xf32, #tpu.memory_space<vmem>>, vector<8x384xf32>,
    %c1_47 = arith.constant 1 : index
    %c0_48 = arith.constant 0 : index
    %c19_49 = arith.constant 19 : index
    %39 = vector.load %arg1[%c1_47, %c0_48, %c19_49] : memref<2x8x432xf32, #tpu.memory_space<vmem>>, vector<1x8x384xf32>
    %40 = vector.shape_cast %39 : vector<1x8x384xf32> to vector<8x384xf32>
    %c32_50 = arith.constant 32 : index
    %c384_51 = arith.constant 384 : index
    %41 = vector.load %arg4[%c32_50, %c384_51] : memref<80x768xf32, #tpu.memory_space<vmem>>, vector<8x384xf32>
    tpu.vector_store %arg4[%c32_50, %c384_51], %40 {strides = array<i32>} : memref<80x768xf32, #tpu.memory_space<vmem>>, vector<8x384xf32>,
    %c1_52 = arith.constant 1 : index
    %c0_53 = arith.constant 0 : index
    %c20_54 = arith.constant 20 : index
    %42 = vector.load %arg1[%c1_52, %c0_53, %c20_54] : memref<2x8x432xf32, #tpu.memory_space<vmem>>, vector<1x8x384xf32>
    %43 = vector.shape_cast %42 : vector<1x8x384xf32> to vector<8x384xf32>
    %c40_55 = arith.constant 40 : index
    %c384_56 = arith.constant 384 : index
    %44 = vector.load %arg4[%c40_55, %c384_56] : memref<80x768xf32, #tpu.memory_space<vmem>>, vector<8x384xf32>
    tpu.vector_store %arg4[%c40_55, %c384_56], %43 {strides = array<i32>} : memref<80x768xf32, #tpu.memory_space<vmem>>, vector<8x384xf32>,
    %c1_57 = arith.constant 1 : index
    %c0_58 = arith.constant 0 : index
    %c36_59 = arith.constant 36 : index
    %45 = vector.load %arg1[%c1_57, %c0_58, %c36_59] : memref<2x8x432xf32, #tpu.memory_space<vmem>>, vector<1x8x384xf32>
    %46 = vector.shape_cast %45 : vector<1x8x384xf32> to vector<8x384xf32>
    %c48_60 = arith.constant 48 : index
    %c384_61 = arith.constant 384 : index
    %47 = vector.load %arg4[%c48_60, %c384_61] : memref<80x768xf32, #tpu.memory_space<vmem>>, vector<8x384xf32>
    tpu.vector_store %arg4[%c48_60, %c384_61], %46 {strides = array<i32>} : memref<80x768xf32, #tpu.memory_space<vmem>>, vector<8x384xf32>,
    %c1_62 = arith.constant 1 : index
    %c0_63 = arith.constant 0 : index
    %c37_64 = arith.constant 37 : index
    %48 = vector.load %arg1[%c1_62, %c0_63, %c37_64] : memref<2x8x432xf32, #tpu.memory_space<vmem>>, vector<1x8x384xf32>
    %49 = vector.shape_cast %48 : vector<1x8x384xf32> to vector<8x384xf32>
    %c56_65 = arith.constant 56 : index
    %c384_66 = arith.constant 384 : index
    %50 = vector.load %arg4[%c56_65, %c384_66] : memref<80x768xf32, #tpu.memory_space<vmem>>, vector<8x384xf32>
    tpu.vector_store %arg4[%c56_65, %c384_66], %49 {strides = array<i32>} : memref<80x768xf32, #tpu.memory_space<vmem>>, vector<8x384xf32>,
    %c1_67 = arith.constant 1 : index
    %c0_68 = arith.constant 0 : index
    %c38_69 = arith.constant 38 : index
    %51 = vector.load %arg1[%c1_67, %c0_68, %c38_69] : memref<2x8x432xf32, #tpu.memory_space<vmem>>, vector<1x8x384xf32>
    %52 = vector.shape_cast %51 : vector<1x8x384xf32> to vector<8x384xf32>
    %c64_70 = arith.constant 64 : index
    %c384_71 = arith.constant 384 : index
    %53 = vector.load %arg4[%c64_70, %c384_71] : memref<80x768xf32, #tpu.memory_space<vmem>>, vector<8x384xf32>
    tpu.vector_store %arg4[%c64_70, %c384_71], %52 {strides = array<i32>} : memref<80x768xf32, #tpu.memory_space<vmem>>, vector<8x384xf32>,
    %54 = tpu.iota {dimensions = array<i32: 0>} : vector<8x768xi32>
    %c0_i32 = arith.constant 0 : i32
    %55 = vector.broadcast %c0_i32 : i32 to vector<8x768xi32>
    %56 = arith.cmpi eq, %54, %55 : vector<8x768xi32>
    %57 = arith.extui %56 : vector<8x768xi1> to vector<8x768xi32>
    %58 = arith.sitofp %57 : vector<8x768xi32> to vector<8x768xf32>
    %c72 = arith.constant 72 : index
    %c0_72 = arith.constant 0 : index
    %59 = vector.load %arg4[%c72, %c0_72] : memref<80x768xf32, #tpu.memory_space<vmem>>, vector<8x768xf32>
    tpu.vector_store %arg4[%c72, %c0_72], %58 {strides = array<i32>} : memref<80x768xf32, #tpu.memory_space<vmem>>, vector<8x768xf32>,
    %c0_73 = arith.constant 0 : index
    %c0_74 = arith.constant 0 : index
    %60 = vector.load %arg2[%c0_73, %c0_74] : memref<8x80xf32, #tpu.memory_space<vmem>>, vector<8x80xf32>
    %c0_75 = arith.constant 0 : index
    %c0_76 = arith.constant 0 : index
    %61 = vector.load %arg4[%c0_75, %c0_76] : memref<80x768xf32, #tpu.memory_space<vmem>>, vector<80x768xf32>
    %cst = arith.constant dense<0.000000e+00> : vector<8x768xf32>
    %62 = tpu.matmul %60, %61, %cst {dimension_numbers = #tpu.dot_dimension_numbers<[1], [0], [0], [1], [0, 0, 1, 1], [], []>} : vector<8x80xf32>, vector<80x768xf32>, vector<8x768xf32> -> vector<8x768xf32>
    %cst_77 = arith.constant 0.000000e+00 : f32
    %63 = vector.broadcast %cst_77 : f32 to vector<8x768xf32>
    %64 = arith.maximumf %62, %63 : vector<8x768xf32>
    %65 = vector.extract_strided_slice %64 {offsets = [0, 0], sizes = [8, 384], strides = [1, 1]} : vector<8x768xf32> to vector<8x384xf32>
    %c0_78 = arith.constant 0 : index
    %c0_79 = arith.constant 0 : index
    %c0_80 = arith.constant 0 : index
    %66 = vector.load %arg3[%c0_78, %c0_79, %c0_80] : memref<2x8x384xf32, #tpu.memory_space<vmem>>, vector<1x8x384xf32>
    %67 = vector.shape_cast %66 : vector<1x8x384xf32> to vector<8x384xf32>
    %68 = vector.shape_cast %65 : vector<8x384xf32> to vector<1x8x384xf32>
    tpu.vector_store %arg3[%c0_78, %c0_79, %c0_80], %68 {strides = array<i32>} : memref<2x8x384xf32, #tpu.memory_space<vmem>>, vector<1x8x384xf32>,
    %69 = vector.extract_strided_slice %64 {offsets = [0, 384], sizes = [8, 384], strides = [1, 1]} : vector<8x768xf32> to vector<8x384xf32>
    %c1_81 = arith.constant 1 : index
    %c0_82 = arith.constant 0 : index
    %c0_83 = arith.constant 0 : index
    %70 = vector.load %arg3[%c1_81, %c0_82, %c0_83] : memref<2x8x384xf32, #tpu.memory_space<vmem>>, vector<1x8x384xf32>
    %71 = vector.shape_cast %70 : vector<1x8x384xf32> to vector<8x384xf32>
    %72 = vector.shape_cast %69 : vector<8x384xf32> to vector<1x8x384xf32>
    tpu.vector_store %arg3[%c1_81, %c0_82, %c0_83], %72 {strides = array<i32>} : memref<2x8x384xf32, #tpu.memory_space<vmem>>, vector<1x8x384xf32>,
    return
  }
  func.func @transform_0(%arg0: i32) -> (i32, i32, i32) {
    %c0_i32 = arith.constant 0 : i32
    %c0_i32_0 = arith.constant 0 : i32
    %c0_i32_1 = arith.constant 0 : i32
    %c0_i32_2 = arith.constant 0 : i32
    return %c0_i32, %c0_i32_0, %c0_i32_1 : i32, i32, i32
  }
  func.func @transform_1(%arg0: i32) -> (i32, i32) {
    %c0_i32 = arith.constant 0 : i32
    %c0_i32_0 = arith.constant 0 : i32
    %c0_i32_1 = arith.constant 0 : i32
    return %c0_i32, %c0_i32_0 : i32, i32
  }
  func.func @transform_2(%arg0: i32) -> (i32, i32, i32) {
    %c0_i32 = arith.constant 0 : i32
    %c0_i32_0 = arith.constant 0 : i32
    %c0_i32_1 = arith.constant 0 : i32
    %c0_i32_2 = arith.constant 0 : i32
    return %c0_i32, %c0_i32_0, %c0_i32_1 : i32, i32, i32
  }
}

</mosaic_0001>

<llo_original>
// kernel: conv_block_forward.1
$region0: #{conv_block_forward.1}
  #allocation0 [shape = 'u32[]', space=smem, size = 0x4, offset = 0x4, fixed_abs, tag = 'smem constant byte address 0x4 - core index']
  #allocation1 [shape = 'u32[72,128]{1,0:T(1,128)}', space=vmem, size = 0x9000, scoped, tag = 'internal scratch']
  #allocation2 [shape = 'f32[80,768]{1,0:T(8,128)}', space=vmem, size = 0x3c000, scoped, tag = 'scratch operand']
  %s0 = inlined_call_operand.vmem [shape: f32[2,8,432], index: 0, kind: input, shape index: {}]
  %s1 = inlined_call_operand.vmem [shape: f32[8,80], index: 1, kind: input, shape index: {}]
  %s2 = inlined_call_operand.vmem [shape: f32[2,8,384], index: 2, kind: output, shape index: {}]
  %s3 = sld [smem:[#allocation0]]
  $region18: #{conv_block_forward.1} parent=0
    _
  %s5 = ssub.s32 1, %s3
  %s6 = scalar_select 0, %s5, %s3
  // Predicated region
  $region2: #{conv_block_forward.1} parent=0 // pred_check
    _
  $region3: #{conv_block_forward.1} parent=0 // pred_check_branch
    %8 = sbr.rel (0) target = $region5
  $region4: #{conv_block_forward.1} parent=0 // pred_region
    _
  $region5: #{conv_block_forward.1} parent=0 // pred_fallthru
    _
  // Predicated region
  $region6: #{conv_block_forward.1} parent=0 // pred_check
    _
  $region7: #{conv_block_forward.1} parent=0 // pred_check_branch
    %10 = sbr.rel (0) target = $region9
  $region8: #{conv_block_forward.1} parent=0 // pred_region
    _
  $region9: #{conv_block_forward.1} parent=0 // pred_fallthru
    _
  %v11 = vld [vmem:[%s0] sm:$0xff]
  %v12 = vld [vmem:[%s0 + $0x8] sm:$0xff]
  %v13 = vld [vmem:[%s0 + $0x10] sm:$0xff]
  %14 = vst [vmem:[#allocation2] sm:$0xff] %v11
  %15 = vst [vmem:[#allocation2 + $0x8] sm:$0xff] %v12
  %16 = vst [vmem:[#allocation2 + $0x10] sm:$0xff] %v13
  %v17 = vld [vmem:[%s0] sm:$0xff]
  %v18 = vld [vmem:[%s0 + $0x8] sm:$0xff]
  %v19 = vld [vmem:[%s0 + $0x10] sm:$0xff]
  %v20 = vld [vmem:[%s0 + $0x18] sm:$0xff]
  %25 = vrot.lane.b32.xlu0 %v17, 127
  %v26 = vpop.permute.xlu0 %25
  %27 = vrot.lane.b32.xlu0 %v18, 127
  %v28 = vpop.permute.xlu0 %27
  %29 = vrot.lane.b32.xlu0 %v19, 127
  %v30 = vpop.permute.xlu0 %29
  %31 = vrot.lane.b32.xlu0 %v20, 127
  %v32 = vpop.permute.xlu0 %31
  %vm33 = vcmask 1039360
  %v34 = vsel %vm33, %v26, %v28
  %v35 = vsel %vm33, %v28, %v30
  %v36 = vsel %vm33, %v30, %v32
  %40 = vst [vmem:[#allocation2 + $0x30] sm:$0xff] %v34
  %41 = vst [vmem:[#allocation2 + $0x38] sm:$0xff] %v35
  %42 = vst [vmem:[#allocation2 + $0x40] sm:$0xff] %v36
  %v43 = vld [vmem:[%s0] sm:$0xff]
  %v44 = vld [vmem:[%s0 + $0x8] sm:$0xff]
  %v45 = vld [vmem:[%s0 + $0x10] sm:$0xff]
  %v46 = vld [vmem:[%s0 + $0x18] sm:$0xff]
  %51 = vrot.lane.b32.xlu0 %v43, 126
  %v52 = vpop.permute.xlu0 %51
  %53 = vrot.lane.b32.xlu0 %v44, 126
  %v54 = vpop.permute.xlu0 %53
  %55 = vrot.lane.b32.xlu0 %v45, 126
  %v56 = vpop.permute.xlu0 %55
  %57 = vrot.lane.b32.xlu0 %v46, 126
  %v58 = vpop.permute.xlu0 %57
  %vm59 = vcmask 1031168
  %v60 = vsel %vm59, %v52, %v54
  %v61 = vsel %vm59, %v54, %v56
  %v62 = vsel %vm59, %v56, %v58
  %66 = vst [vmem:[#allocation2 + $0x60] sm:$0xff] %v60
  %67 = vst [vmem:[#allocation2 + $0x68] sm:$0xff] %v61
  %68 = vst [vmem:[#allocation2 + $0x70] sm:$0xff] %v62
  %v69 = vld [vmem:[%s0] sm:$0xff]
  %v70 = vld [vmem:[%s0 + $0x8] sm:$0xff]
  %v71 = vld [vmem:[%s0 + $0x10] sm:$0xff]
  %v72 = vld [vmem:[%s0 + $0x18] sm:$0xff]
  %77 = vrot.lane.b32.xlu0 %v69, 110
  %v78 = vpop.permute.xlu0 %77
  %79 = vrot.lane.b32.xlu0 %v70, 110
  %v80 = vpop.permute.xlu0 %79
  %81 = vrot.lane.b32.xlu0 %v71, 110
  %v82 = vpop.permute.xlu0 %81
  %83 = vrot.lane.b32.xlu0 %v72, 110
  %v84 = vpop.permute.xlu0 %83
  %vm85 = vcmask 900096
  %v86 = vsel %vm85, %v78, %v80
  %v87 = vsel %vm85, %v80, %v82
  %v88 = vsel %vm85, %v82, %v84
  %92 = vst [vmem:[#allocation2 + $0x90] sm:$0xff] %v86
  %93 = vst [vmem:[#allocation2 + $0x98] sm:$0xff] %v87
  %94 = vst [vmem:[#allocation2 + $0xa0] sm:$0xff] %v88
  %v95 = vld [vmem:[%s0] sm:$0xff]
  %v96 = vld [vmem:[%s0 + $0x8] sm:$0xff]
  %v97 = vld [vmem:[%s0 + $0x10] sm:$0xff]
  %v98 = vld [vmem:[%s0 + $0x18] sm:$0xff]
  %103 = vrot.lane.b32.xlu0 %v95, 109
  %v104 = vpop.permute.xlu0 %103
  %105 = vrot.lane.b32.xlu0 %v96, 109
  %v106 = vpop.permute.xlu0 %105
  %107 = vrot.lane.b32.xlu0 %v97, 109
  %v108 = vpop.permute.xlu0 %107
  %109 = vrot.lane.b32.xlu0 %v98, 109
  %v110 = vpop.permute.xlu0 %109
  %vm111 = vcmask 891904
  %v112 = vsel %vm111, %v104, %v106
  %v113 = vsel %vm111, %v106, %v108
  %v114 = vsel %vm111, %v108, %v110
  %118 = vst [vmem:[#allocation2 + $0xc0] sm:$0xff] %v112
  %119 = vst [vmem:[#allocation2 + $0xc8] sm:$0xff] %v113
  %120 = vst [vmem:[#allocation2 + $0xd0] sm:$0xff] %v114
  %v121 = vld [vmem:[%s0] sm:$0xff]
  %v122 = vld [vmem:[%s0 + $0x8] sm:$0xff]
  %v123 = vld [vmem:[%s0 + $0x10] sm:$0xff]
  %v124 = vld [vmem:[%s0 + $0x18] sm:$0xff]
  %129 = vrot.lane.b32.xlu0 %v121, 108
  %v130 = vpop.permute.xlu0 %129
  %131 = vrot.lane.b32.xlu0 %v122, 108
  %v132 = vpop.permute.xlu0 %131
  %133 = vrot.lane.b32.xlu0 %v123, 108
  %v134 = vpop.permute.xlu0 %133
  %135 = vrot.lane.b32.xlu0 %v124, 108
  %v136 = vpop.permute.xlu0 %135
  %vm137 = vcmask 883712
  %v138 = vsel %vm137, %v130, %v132
  %v139 = vsel %vm137, %v132, %v134
  %v140 = vsel %vm137, %v134, %v136
  %144 = vst [vmem:[#allocation2 + $0xf0] sm:$0xff] %v138
  %145 = vst [vmem:[#allocation2 + $0xf8] sm:$0xff] %v139
  %146 = vst [vmem:[#allocation2 + $0x100] sm:$0xff] %v140
  %v147 = vld [vmem:[%s0] sm:$0xff]
  %v148 = vld [vmem:[%s0 + $0x8] sm:$0xff]
  %v149 = vld [vmem:[%s0 + $0x10] sm:$0xff]
  %v150 = vld [vmem:[%s0 + $0x18] sm:$0xff]
  %155 = vrot.lane.b32.xlu0 %v147, 92
  %v156 = vpop.permute.xlu0 %155
  %157 = vrot.lane.b32.xlu0 %v148, 92
  %v158 = vpop.permute.xlu0 %157
  %159 = vrot.lane.b32.xlu0 %v149, 92
  %v160 = vpop.permute.xlu0 %159
  %161 = vrot.lane.b32.xlu0 %v150, 92
  %v162 = vpop.permute.xlu0 %161
  %vm163 = vcmask 752640
  %v164 = vsel %vm163, %v156, %v158
  %v165 = vsel %vm163, %v158, %v160
  %v166 = vsel %vm163, %v160, %v162
  %170 = vst [vmem:[#allocation2 + $0x120] sm:$0xff] %v164
  %171 = vst [vmem:[#allocation2 + $0x128] sm:$0xff] %v165
  %172 = vst [vmem:[#allocation2 + $0x130] sm:$0xff] %v166
  %v173 = vld [vmem:[%s0] sm:$0xff]
  %v174 = vld [vmem:[%s0 + $0x8] sm:$0xff]
  %v175 = vld [vmem:[%s0 + $0x10] sm:$0xff]
  %v176 = vld [vmem:[%s0 + $0x18] sm:$0xff]
  %181 = vrot.lane.b32.xlu0 %v173, 91
  %v182 = vpop.permute.xlu0 %181
  %183 = vrot.lane.b32.xlu0 %v174, 91
  %v184 = vpop.permute.xlu0 %183
  %185 = vrot.lane.b32.xlu0 %v175, 91
  %v186 = vpop.permute.xlu0 %185
  %187 = vrot.lane.b32.xlu0 %v176, 91
  %v188 = vpop.permute.xlu0 %187
  %vm189 = vcmask 744448
  %v190 = vsel %vm189, %v182, %v184
  %v191 = vsel %vm189, %v184, %v186
  %v192 = vsel %vm189, %v186, %v188
  %196 = vst [vmem:[#allocation2 + $0x150] sm:$0xff] %v190
  %197 = vst [vmem:[#allocation2 + $0x158] sm:$0xff] %v191
  %198 = vst [vmem:[#allocation2 + $0x160] sm:$0xff] %v192
  %v199 = vld [vmem:[%s0] sm:$0xff]
  %v200 = vld [vmem:[%s0 + $0x8] sm:$0xff]
  %v201 = vld [vmem:[%s0 + $0x10] sm:$0xff]
  %v202 = vld [vmem:[%s0 + $0x18] sm:$0xff]
  %207 = vrot.lane.b32.xlu0 %v199, 90
  %v208 = vpop.permute.xlu0 %207
  %209 = vrot.lane.b32.xlu0 %v200, 90
  %v210 = vpop.permute.xlu0 %209
  %211 = vrot.lane.b32.xlu0 %v201, 90
  %v212 = vpop.permute.xlu0 %211
  %213 = vrot.lane.b32.xlu0 %v202, 90
  %v214 = vpop.permute.xlu0 %213
  %vm215 = vcmask 736256
  %v216 = vsel %vm215, %v208, %v210
  %v217 = vsel %vm215, %v210, %v212
  %v218 = vsel %vm215, %v212, %v214
  %222 = vst [vmem:[#allocation2 + $0x180] sm:$0xff] %v216
  %223 = vst [vmem:[#allocation2 + $0x188] sm:$0xff] %v217
  %224 = vst [vmem:[#allocation2 + $0x190] sm:$0xff] %v218
  %s225 = scalar_lea.vmem %s0, 32
  %v226 = vld [vmem:[%s225] sm:$0xff]
  %v227 = vld [vmem:[%s225 + $0x8] sm:$0xff]
  %v228 = vld [vmem:[%s225 + $0x10] sm:$0xff]
  %229 = vst [vmem:[#allocation2 + $0x18] sm:$0xff] %v226
  %230 = vst [vmem:[#allocation2 + $0x20] sm:$0xff] %v227
  %231 = vst [vmem:[#allocation2 + $0x28] sm:$0xff] %v228
  %v232 = vld [vmem:[%s225] sm:$0xff]
  %v233 = vld [vmem:[%s225 + $0x8] sm:$0xff]
  %v234 = vld [vmem:[%s225 + $0x10] sm:$0xff]
  %v235 = vld [vmem:[%s225 + $0x18] sm:$0xff]
  %240 = vrot.lane.b32.xlu0 %v232, 127
  %v241 = vpop.permute.xlu0 %240
  %242 = vrot.lane.b32.xlu0 %v233, 127
  %v243 = vpop.permute.xlu0 %242
  %244 = vrot.lane.b32.xlu0 %v234, 127
  %v245 = vpop.permute.xlu0 %244
  %246 = vrot.lane.b32.xlu0 %v235, 127
  %v247 = vpop.permute.xlu0 %246
  %v248 = vsel %vm33, %v241, %v243
  %v249 = vsel %vm33, %v243, %v245
  %v250 = vsel %vm33, %v245, %v247
  %254 = vst [vmem:[#allocation2 + $0x48] sm:$0xff] %v248
  %255 = vst [vmem:[#allocation2 + $0x50] sm:$0xff] %v249
  %256 = vst [vmem:[#allocation2 + $0x58] sm:$0xff] %v250
  %v257 = vld [vmem:[%s225] sm:$0xff]
  %v258 = vld [vmem:[%s225 + $0x8] sm:$0xff]
  %v259 = vld [vmem:[%s225 + $0x10] sm:$0xff]
  %v260 = vld [vmem:[%s225 + $0x18] sm:$0xff]
  %265 = vrot.lane.b32.xlu0 %v257, 126
  %v266 = vpop.permute.xlu0 %265
  %267 = vrot.lane.b32.xlu0 %v258, 126
  %v268 = vpop.permute.xlu0 %267
  %269 = vrot.lane.b32.xlu0 %v259, 126
  %v270 = vpop.permute.xlu0 %269
  %271 = vrot.lane.b32.xlu0 %v260, 126
  %v272 = vpop.permute.xlu0 %271
  %v273 = vsel %vm59, %v266, %v268
  %v274 = vsel %vm59, %v268, %v270
  %v275 = vsel %vm59, %v270, %v272
  %279 = vst [vmem:[#allocation2 + $0x78] sm:$0xff] %v273
  %280 = vst [vmem:[#allocation2 + $0x80] sm:$0xff] %v274
  %281 = vst [vmem:[#allocation2 + $0x88] sm:$0xff] %v275
  %v282 = vld [vmem:[%s225] sm:$0xff]
  %v283 = vld [vmem:[%s225 + $0x8] sm:$0xff]
  %v284 = vld [vmem:[%s225 + $0x10] sm:$0xff]
  %v285 = vld [vmem:[%s225 + $0x18] sm:$0xff]
  %290 = vrot.lane.b32.xlu0 %v282, 110
  %v291 = vpop.permute.xlu0 %290
  %292 = vrot.lane.b32.xlu0 %v283, 110
  %v293 = vpop.permute.xlu0 %292
  %294 = vrot.lane.b32.xlu0 %v284, 110
  %v295 = vpop.permute.xlu0 %294
  %296 = vrot.lane.b32.xlu0 %v285, 110
  %v297 = vpop.permute.xlu0 %296
  %v298 = vsel %vm85, %v291, %v293
  %v299 = vsel %vm85, %v293, %v295
  %v300 = vsel %vm85, %v295, %v297
  %304 = vst [vmem:[#allocation2 + $0xa8] sm:$0xff] %v298
  %305 = vst [vmem:[#allocation2 + $0xb0] sm:$0xff] %v299
  %306 = vst [vmem:[#allocation2 + $0xb8] sm:$0xff] %v300
  %v307 = vld [vmem:[%s225] sm:$0xff]
  %v308 = vld [vmem:[%s225 + $0x8] sm:$0xff]
  %v309 = vld [vmem:[%s225 + $0x10] sm:$0xff]
  %v310 = vld [vmem:[%s225 + $0x18] sm:$0xff]
  %315 = vrot.lane.b32.xlu0 %v307, 109
  %v316 = vpop.permute.xlu0 %315
  %317 = vrot.lane.b32.xlu0 %v308, 109
  %v318 = vpop.permute.xlu0 %317
  %319 = vrot.lane.b32.xlu0 %v309, 109
  %v320 = vpop.permute.xlu0 %319
  %321 = vrot.lane.b32.xlu0 %v310, 109
  %v322 = vpop.permute.xlu0 %321
  %v323 = vsel %vm111, %v316, %v318
  %v324 = vsel %vm111, %v318, %v320
  %v325 = vsel %vm111, %v320, %v322
  %329 = vst [vmem:[#allocation2 + $0xd8] sm:$0xff] %v323
  %330 = vst [vmem:[#allocation2 + $0xe0] sm:$0xff] %v324
  %331 = vst [vmem:[#allocation2 + $0xe8] sm:$0xff] %v325
  %v332 = vld [vmem:[%s225] sm:$0xff]
  %v333 = vld [vmem:[%s225 + $0x8] sm:$0xff]
  %v334 = vld [vmem:[%s225 + $0x10] sm:$0xff]
  %v335 = vld [vmem:[%s225 + $0x18] sm:$0xff]
  %340 = vrot.lane.b32.xlu0 %v332, 108
  %v341 = vpop.permute.xlu0 %340
  %342 = vrot.lane.b32.xlu0 %v333, 108
  %v343 = vpop.permute.xlu0 %342
  %344 = vrot.lane.b32.xlu0 %v334, 108
  %v345 = vpop.permute.xlu0 %344
  %346 = vrot.lane.b32.xlu0 %v335, 108
  %v347 = vpop.permute.xlu0 %346
  %v348 = vsel %vm137, %v341, %v343
  %v349 = vsel %vm137, %v343, %v345
  %v350 = vsel %vm137, %v345, %v347
  %354 = vst [vmem:[#allocation2 + $0x108] sm:$0xff] %v348
  %355 = vst [vmem:[#allocation2 + $0x110] sm:$0xff] %v349
  %356 = vst [vmem:[#allocation2 + $0x118] sm:$0xff] %v350
  %v357 = vld [vmem:[%s225] sm:$0xff]
  %v358 = vld [vmem:[%s225 + $0x8] sm:$0xff]
  %v359 = vld [vmem:[%s225 + $0x10] sm:$0xff]
  %v360 = vld [vmem:[%s225 + $0x18] sm:$0xff]
  %365 = vrot.lane.b32.xlu0 %v357, 92
  %v366 = vpop.permute.xlu0 %365
  %367 = vrot.lane.b32.xlu0 %v358, 92
  %v368 = vpop.permute.xlu0 %367
  %369 = vrot.lane.b32.xlu0 %v359, 92
  %v370 = vpop.permute.xlu0 %369
  %371 = vrot.lane.b32.xlu0 %v360, 92
  %v372 = vpop.permute.xlu0 %371
  %v373 = vsel %vm163, %v366, %v368
  %v374 = vsel %vm163, %v368, %v370
  %v375 = vsel %vm163, %v370, %v372
  %379 = vst [vmem:[#allocation2 + $0x138] sm:$0xff] %v373
  %380 = vst [vmem:[#allocation2 + $0x140] sm:$0xff] %v374
  %381 = vst [vmem:[#allocation2 + $0x148] sm:$0xff] %v375
  %v382 = vld [vmem:[%s225] sm:$0xff]
  %v383 = vld [vmem:[%s225 + $0x8] sm:$0xff]
  %v384 = vld [vmem:[%s225 + $0x10] sm:$0xff]
  %v385 = vld [vmem:[%s225 + $0x18] sm:$0xff]
  %390 = vrot.lane.b32.xlu0 %v382, 91
  %v391 = vpop.permute.xlu0 %390
  %392 = vrot.lane.b32.xlu0 %v383, 91
  %v393 = vpop.permute.xlu0 %392
  %394 = vrot.lane.b32.xlu0 %v384, 91
  %v395 = vpop.permute.xlu0 %394
  %396 = vrot.lane.b32.xlu0 %v385, 91
  %v397 = vpop.permute.xlu0 %396
  %v398 = vsel %vm189, %v391, %v393
  %v399 = vsel %vm189, %v393, %v395
  %v400 = vsel %vm189, %v395, %v397
  %404 = vst [vmem:[#allocation2 + $0x168] sm:$0xff] %v398
  %405 = vst [vmem:[#allocation2 + $0x170] sm:$0xff] %v399
  %406 = vst [vmem:[#allocation2 + $0x178] sm:$0xff] %v400
  %v407 = vld [vmem:[%s225] sm:$0xff]
  %v408 = vld [vmem:[%s225 + $0x8] sm:$0xff]
  %v409 = vld [vmem:[%s225 + $0x10] sm:$0xff]
  %v410 = vld [vmem:[%s225 + $0x18] sm:$0xff]
  %415 = vrot.lane.b32.xlu0 %v407, 90
  %v416 = vpop.permute.xlu0 %415
  %417 = vrot.lane.b32.xlu0 %v408, 90
  %v418 = vpop.permute.xlu0 %417
  %419 = vrot.lane.b32.xlu0 %v409, 90
  %v420 = vpop.permute.xlu0 %419
  %421 = vrot.lane.b32.xlu0 %v410, 90
  %v422 = vpop.permute.xlu0 %421
  %v423 = vsel %vm215, %v416, %v418
  %v424 = vsel %vm215, %v418, %v420
  %v425 = vsel %vm215, %v420, %v422
  %429 = vst [vmem:[#allocation2 + $0x198] sm:$0xff] %v423
  %430 = vst [vmem:[#allocation2 + $0x1a0] sm:$0xff] %v424
  %431 = vst [vmem:[#allocation2 + $0x1a8] sm:$0xff] %v425
  %v432 = vlaneseq
  %v433 = vshrl.u32 %v432, 7
  %vm434 = vcmp.eq.s32.totalorder %v433, 0
  %v435 = vsel %vm434, 1, 0
  %v436 = vcvt.s32.f32 %v435
  %437 = vst [vmem:[#allocation2 + $0x1b0] sm:$0xff] %v436
  %438 = vst [vmem:[#allocation2 + $0x1b8] sm:$0xff] %v436
  %439 = vst [vmem:[#allocation2 + $0x1c0] sm:$0xff] %v436
  %440 = vst [vmem:[#allocation2 + $0x1c8] sm:$0xff] %v436
  %441 = vst [vmem:[#allocation2 + $0x1d0] sm:$0xff] %v436
  %442 = vst [vmem:[#allocation2 + $0x1d8] sm:$0xff] %v436
  %v443 = vld [vmem:[%s1] sm:$0xff]
  %v444 = vld [vmem:[#allocation2] sm:$0xff]
  %v445 = vld [vmem:[#allocation2 + $0x8] sm:$0xff]
  %v446 = vld [vmem:[#allocation2 + $0x10] sm:$0xff]
  %v447 = vld [vmem:[#allocation2 + $0x18] sm:$0xff]
  %v448 = vld [vmem:[#allocation2 + $0x20] sm:$0xff]
  %v449 = vld [vmem:[#allocation2 + $0x28] sm:$0xff]
  %v450 = vld [vmem:[#allocation2 + $0x30] sm:$0xff]
  %v451 = vld [vmem:[#allocation2 + $0x38] sm:$0xff]
  %v452 = vld [vmem:[#allocation2 + $0x40] sm:$0xff]
  %v453 = vld [vmem:[#allocation2 + $0x48] sm:$0xff]
  %v454 = vld [vmem:[#allocation2 + $0x50] sm:$0xff]
  %v455 = vld [vmem:[#allocation2 + $0x58] sm:$0xff]
  %v456 = vld [vmem:[#allocation2 + $0x60] sm:$0xff]
  %v457 = vld [vmem:[#allocation2 + $0x68] sm:$0xff]
  %v458 = vld [vmem:[#allocation2 + $0x70] sm:$0xff]
  %v459 = vld [vmem:[#allocation2 + $0x78] sm:$0xff]
  %v460 = vld [vmem:[#allocation2 + $0x80] sm:$0xff]
  %v461 = vld [vmem:[#allocation2 + $0x88] sm:$0xff]
  %v462 = vld [vmem:[#allocation2 + $0x90] sm:$0xff]
  %v463 = vld [vmem:[#allocation2 + $0x98] sm:$0xff]
  %v464 = vld [vmem:[#allocation2 + $0xa0] sm:$0xff]
  %v465 = vld [vmem:[#allocation2 + $0xa8] sm:$0xff]
  %v466 = vld [vmem:[#allocation2 + $0xb0] sm:$0xff]
  %v467 = vld [vmem:[#allocation2 + $0xb8] sm:$0xff]
  %v468 = vld [vmem:[#allocation2 + $0xc0] sm:$0xff]
  %v469 = vld [vmem:[#allocation2 + $0xc8] sm:$0xff]
  %v470 = vld [vmem:[#allocation2 + $0xd0] sm:$0xff]
  %v471 = vld [vmem:[#allocation2 + $0xd8] sm:$0xff]
  %v472 = vld [vmem:[#allocation2 + $0xe0] sm:$0xff]
  %v473 = vld [vmem:[#allocation2 + $0xe8] sm:$0xff]
  %v474 = vld [vmem:[#allocation2 + $0xf0] sm:$0xff]
  %v475 = vld [vmem:[#allocation2 + $0xf8] sm:$0xff]
  %v476 = vld [vmem:[#allocation2 + $0x100] sm:$0xff]
  %v477 = vld [vmem:[#allocation2 + $0x108] sm:$0xff]
  %v478 = vld [vmem:[#allocation2 + $0x110] sm:$0xff]
  %v479 = vld [vmem:[#allocation2 + $0x118] sm:$0xff]
  %v480 = vld [vmem:[#allocation2 + $0x120] sm:$0xff]
  %v481 = vld [vmem:[#allocation2 + $0x128] sm:$0xff]
  %v482 = vld [vmem:[#allocation2 + $0x130] sm:$0xff]
  %v483 = vld [vmem:[#allocation2 + $0x138] sm:$0xff]
  %v484 = vld [vmem:[#allocation2 + $0x140] sm:$0xff]
  %v485 = vld [vmem:[#allocation2 + $0x148] sm:$0xff]
  %v486 = vld [vmem:[#allocation2 + $0x150] sm:$0xff]
  %v487 = vld [vmem:[#allocation2 + $0x158] sm:$0xff]
  %v488 = vld [vmem:[#allocation2 + $0x160] sm:$0xff]
  %v489 = vld [vmem:[#allocation2 + $0x168] sm:$0xff]
  %v490 = vld [vmem:[#allocation2 + $0x170] sm:$0xff]
  %v491 = vld [vmem:[#allocation2 + $0x178] sm:$0xff]
  %v492 = vld [vmem:[#allocation2 + $0x180] sm:$0xff]
  %v493 = vld [vmem:[#allocation2 + $0x188] sm:$0xff]
  %v494 = vld [vmem:[#allocation2 + $0x190] sm:$0xff]
  %v495 = vld [vmem:[#allocation2 + $0x198] sm:$0xff]
  %v496 = vld [vmem:[#allocation2 + $0x1a0] sm:$0xff]
  %v497 = vld [vmem:[#allocation2 + $0x1a8] sm:$0xff]
  %v498 = vld [vmem:[#allocation2 + $0x1b0] sm:$0xff]
  %v499 = vld [vmem:[#allocation2 + $0x1b8] sm:$0xff]
  %v500 = vld [vmem:[#allocation2 + $0x1c0] sm:$0xff]
  %v501 = vld [vmem:[#allocation2 + $0x1c8] sm:$0xff]
  %v502 = vld [vmem:[#allocation2 + $0x1d0] sm:$0xff]
  %v503 = vld [vmem:[#allocation2 + $0x1d8] sm:$0xff]
  %vm504 = vcmask 654336
  %v506 = vsel %vm504, %v443, 0
  %508 = vmatpush.msra.mxu0 0.0
  %509 = vmatpush.msra.mxu0 0.0
  %510 = vmatpush.msra.mxu0 0.0
  %511 = vmatpush.msra.mxu0 0.0
  %512 = vmatpush.msra.mxu0 0.0
  %513 = vmatpush.msra.mxu0 0.0
  %514 = vmatpush.msra.mxu0 %v498
  %515 = vmatpush.msra.mxu0 %v492
  %516 = vmatpush.msra.mxu0 %v486
  %517 = vmatpush.msra.mxu0 %v480
  %518 = vmatpush.msra.mxu0 %v474
  %519 = vmatpush.msra.mxu0 %v468
  %520 = vmatpush.msra.mxu0 %v462
  %521 = vmatpush.msra.mxu0 %v456
  %522 = vmatpush.msra.mxu0 %v450
  %523 = vmatpush.msra.mxu0 %v444
  %524 = vmatmul.f32.gmra.mxu0 %v506
  %v525 = vpop.f32.mrf.mxu0
  %v526 = vadd.f32 0.0, %v525
  %527 = vdwg.mxu0
  %528 = vmatpush.msra.mxu0 0.0
  %529 = vmatpush.msra.mxu0 0.0
  %530 = vmatpush.msra.mxu0 0.0
  %531 = vmatpush.msra.mxu0 0.0
  %532 = vmatpush.msra.mxu0 0.0
  %533 = vmatpush.msra.mxu0 0.0
  %534 = vmatpush.msra.mxu0 %v499
  %535 = vmatpush.msra.mxu0 %v493
  %536 = vmatpush.msra.mxu0 %v487
  %537 = vmatpush.msra.mxu0 %v481
  %538 = vmatpush.msra.mxu0 %v475
  %539 = vmatpush.msra.mxu0 %v469
  %540 = vmatpush.msra.mxu0 %v463
  %541 = vmatpush.msra.mxu0 %v457
  %542 = vmatpush.msra.mxu0 %v451
  %543 = vmatpush.msra.mxu0 %v445
  %544 = vmatmul.f32.gmra.mxu0 %v506
  %v545 = vpop.f32.mrf.mxu0
  %v546 = vadd.f32 0.0, %v545
  %547 = vdwg.mxu0
  %548 = vmatpush.msra.mxu0 0.0
  %549 = vmatpush.msra.mxu0 0.0
  %550 = vmatpush.msra.mxu0 0.0
  %551 = vmatpush.msra.mxu0 0.0
  %552 = vmatpush.msra.mxu0 0.0
  %553 = vmatpush.msra.mxu0 0.0
  %554 = vmatpush.msra.mxu0 %v500
  %555 = vmatpush.msra.mxu0 %v494
  %556 = vmatpush.msra.mxu0 %v488
  %557 = vmatpush.msra.mxu0 %v482
  %558 = vmatpush.msra.mxu0 %v476
  %559 = vmatpush.msra.mxu0 %v470
  %560 = vmatpush.msra.mxu0 %v464
  %561 = vmatpush.msra.mxu0 %v458
  %562 = vmatpush.msra.mxu0 %v452
  %563 = vmatpush.msra.mxu0 %v446
  %564 = vmatmul.f32.gmra.mxu0 %v506
  %v565 = vpop.f32.mrf.mxu0
  %v566 = vadd.f32 0.0, %v565
  %567 = vdwg.mxu0
  %568 = vmatpush.msra.mxu0 0.0
  %569 = vmatpush.msra.mxu0 0.0
  %570 = vmatpush.msra.mxu0 0.0
  %571 = vmatpush.msra.mxu0 0.0
  %572 = vmatpush.msra.mxu0 0.0
  %573 = vmatpush.msra.mxu0 0.0
  %574 = vmatpush.msra.mxu0 %v501
  %575 = vmatpush.msra.mxu0 %v495
  %576 = vmatpush.msra.mxu0 %v489
  %577 = vmatpush.msra.mxu0 %v483
  %578 = vmatpush.msra.mxu0 %v477
  %579 = vmatpush.msra.mxu0 %v471
  %580 = vmatpush.msra.mxu0 %v465
  %581 = vmatpush.msra.mxu0 %v459
  %582 = vmatpush.msra.mxu0 %v453
  %583 = vmatpush.msra.mxu0 %v447
  %584 = vmatmul.f32.gmra.mxu0 %v506
  %v585 = vpop.f32.mrf.mxu0
  %v586 = vadd.f32 0.0, %v585
  %587 = vdwg.mxu0
  %588 = vmatpush.msra.mxu0 0.0
  %589 = vmatpush.msra.mxu0 0.0
  %590 = vmatpush.msra.mxu0 0.0
  %591 = vmatpush.msra.mxu0 0.0
  %592 = vmatpush.msra.mxu0 0.0
  %593 = vmatpush.msra.mxu0 0.0
  %594 = vmatpush.msra.mxu0 %v502
  %595 = vmatpush.msra.mxu0 %v496
  %596 = vmatpush.msra.mxu0 %v490
  %597 = vmatpush.msra.mxu0 %v484
  %598 = vmatpush.msra.mxu0 %v478
  %599 = vmatpush.msra.mxu0 %v472
  %600 = vmatpush.msra.mxu0 %v466
  %601 = vmatpush.msra.mxu0 %v460
  %602 = vmatpush.msra.mxu0 %v454
  %603 = vmatpush.msra.mxu0 %v448
  %604 = vmatmul.f32.gmra.mxu0 %v506
  %v605 = vpop.f32.mrf.mxu0
  %v606 = vadd.f32 0.0, %v605
  %607 = vdwg.mxu0
  %608 = vmatpush.msra.mxu0 0.0
  %609 = vmatpush.msra.mxu0 0.0
  %610 = vmatpush.msra.mxu0 0.0
  %611 = vmatpush.msra.mxu0 0.0
  %612 = vmatpush.msra.mxu0 0.0
  %613 = vmatpush.msra.mxu0 0.0
  %614 = vmatpush.msra.mxu0 %v503
  %615 = vmatpush.msra.mxu0 %v497
  %616 = vmatpush.msra.mxu0 %v491
  %617 = vmatpush.msra.mxu0 %v485
  %618 = vmatpush.msra.mxu0 %v479
  %619 = vmatpush.msra.mxu0 %v473
  %620 = vmatpush.msra.mxu0 %v467
  %621 = vmatpush.msra.mxu0 %v461
  %622 = vmatpush.msra.mxu0 %v455
  %623 = vmatpush.msra.mxu0 %v449
  %624 = vmatmul.f32.gmra.mxu0 %v506
  %v625 = vpop.f32.mrf.mxu0
  %v626 = vadd.f32 0.0, %v625
  %627 = vdwg.mxu0
  %v628 = vmax.f32 %v526, 0.0
  %v629 = vmax.f32 %v546, 0.0
  %v630 = vmax.f32 %v566, 0.0
  %v631 = vmax.f32 %v586, 0.0
  %v632 = vmax.f32 %v606, 0.0
  %v633 = vmax.f32 %v626, 0.0
  %634 = vst [vmem:[%s2] sm:$0xff] %v628
  %635 = vst [vmem:[%s2 + $0x8] sm:$0xff] %v629
  %636 = vst [vmem:[%s2 + $0x10] sm:$0xff] %v630
  %s637 = scalar_lea.vmem %s2, 24
  %638 = vst [vmem:[%s637] sm:$0xff] %v631
  %639 = vst [vmem:[%s637 + $0x8] sm:$0xff] %v632
  %640 = vst [vmem:[%s637 + $0x10] sm:$0xff] %v633
  // Predicated region
  $region10: #{conv_block_forward.1} parent=0 // pred_check
    _
  $region11: #{conv_block_forward.1} parent=0 // pred_check_branch
    %642 = sbr.rel (0) target = $region13
  $region12: #{conv_block_forward.1} parent=0 // pred_region
    _
  $region13: #{conv_block_forward.1} parent=0 // pred_fallthru
    _
  // Predicated region
  $region14: #{conv_block_forward.1} parent=0 // pred_check
    _
  $region15: #{conv_block_forward.1} parent=0 // pred_check_branch
    %644 = sbr.rel (0) target = $region17
  $region16: #{conv_block_forward.1} parent=0 // pred_region
    _
  $region17: #{conv_block_forward.1} parent=0 // pred_fallthru
    _

</llo_original>
